<compile_context>
chip_gen: v7x
topology: tpu7x:2x2x1
jax: 0.10.0
libtpu: 0.0.40
codegen_flags: <defaults>
</compile_context>

<pallas_src>
import jax
import jax.numpy as jnp
from jax.experimental import pallas as pl
from jax.experimental.pallas import tpu as pltpu

_LANE = 128

# Per-generation tuning: per-buffer tile target, scoped-VMEM override, and
# whether the chip has 2 TensorCores (v7x) so CORE_PARALLEL pays off.
_GEN_PARAMS = {
    "v7x": dict(target_bytes=6 << 20, vmem_limit_bytes=48 << 20, two_cores=True),
    "v6e": dict(target_bytes=4 << 20, vmem_limit_bytes=64 << 20, two_cores=False),
    "v5e": dict(target_bytes=2 << 20, vmem_limit_bytes=None, two_cores=False),
}
_DEFAULT_PARAMS = dict(target_bytes=2 << 20, vmem_limit_bytes=None, two_cores=False)


def _tpu_generation():
    """Best-effort TPU generation detection ('v5e' | 'v6e' | 'v7x' | None)."""
    try:
        kind = jax.devices()[0].device_kind.lower()
    except Exception:
        return None
    if "7" in kind:
        return "v7x"
    if "v6" in kind or "6e" in kind:
        return "v6e"
    if "v5" in kind or "5e" in kind:
        return "v5e"
    return None


def _sublane_multiple(dtype):
    """Sublane packing multiple: 8 for 32-bit, 16 for 16-bit, 32 for 8-bit."""
    bits = jnp.dtype(dtype).itemsize * 8
    return max(8, 256 // bits)


def _quant_kernel(x_ref, o_ref):
    # Compute in f32 (free slack on the VPU; op is mem-bound) so reduced-
    # precision inputs match an fp32 reference, then cast back.
    x = x_ref[...].astype(jnp.float32)
    r = jnp.round(x)                       # round-half-to-even == torch.round
    d = x - r
    o_ref[...] = (r + d * d * d).astype(o_ref.dtype)


def _quant_2d(x2d, gp):
    """Run the streaming kernel over a lane-dense (rows, width) slab."""
    rows, width = x2d.shape
    dtype = x2d.dtype
    itemsize = jnp.dtype(dtype).itemsize
    sub = _sublane_multiple(dtype)

    # Tile sizing: target ~gp['target_bytes'] per buffer, rounded to the
    # dtype's sublane multiple.
    tile_rows = max(sub, (gp["target_bytes"] // (width * itemsize)) // sub * sub)

    # Avoid a degenerate grid=(1,) for non-trivial arrays: keep >= 4 steps so
    # input DMA / compute / output DMA pipeline (and both v7x TCs get work).
    MIN_STEPS = 4
    total_bytes = rows * width * itemsize
    if total_bytes > (2 << 20) and rows >= MIN_STEPS * sub:
        cap = max(sub, (rows // MIN_STEPS) // sub * sub)
        tile_rows = min(tile_rows, cap)
    tile_rows = min(tile_rows, rows)   # full-extent block is always legal

    grid = (pl.cdiv(rows, tile_rows),)

    # CORE_PARALLEL shards the grid axis across the 2 TensorCores on v7x;
    # on single-TC chips plain "parallel" is equivalent to "arbitrary".
    if gp["two_cores"] and grid[0] >= 2:
        semantics = (pltpu.CORE_PARALLEL,)
    else:
        semantics = ("parallel",)

    n = rows * width
    cost = pl.CostEstimate(
        flops=6 * n,                       # sub, 3x mul, add, round-ish
        transcendentals=0,
        bytes_accessed=2 * n * itemsize,   # read + write, strictly mem-bound
    )

    return pl.pallas_call(
        _quant_kernel,
        out_shape=jax.ShapeDtypeStruct((rows, width), dtype),
        grid_spec=pltpu.PrefetchScalarGridSpec(
            num_scalar_prefetch=0,
            grid=grid,
            in_specs=[pl.BlockSpec((tile_rows, width), lambda i: (i, 0))],
            out_specs=pl.BlockSpec((tile_rows, width), lambda i: (i, 0)),
        ),
        compiler_params=pltpu.CompilerParams(
            dimension_semantics=semantics,
            vmem_limit_bytes=gp["vmem_limit_bytes"]),
        cost_estimate=cost,
        # Elementwise with identical in/out shape+dtype: let the output reuse
        # the input buffer (donate at the jit boundary to make it in-place).
        input_output_aliases={0: 0},
    )(x2d)


def example_quant(x):
    """Elementwise round(x) + (x - round(x))**3 via a Pallas TPU kernel."""
    orig_shape = x.shape
    dtype = x.dtype
    n = x.size
    if n == 0:
        return x

    gp = _GEN_PARAMS.get(_tpu_generation(), _DEFAULT_PARAMS)

    x_flat = jnp.ravel(x)

    # 128-aligned bulk goes through Pallas; the tiny (<128 elem) tail is done
    # in plain jnp.  This avoids the old pad-full-array + slice-full-array
    # fallback, which added two extra HBM passes to a mem-bound op.
    n_main = (n // _LANE) * _LANE

    pieces = []
    if n_main > 0:
        # Widest lane-dense slab width that divides the aligned bulk exactly
        # (no pad / post-slice copies needed).
        width = _LANE
        for w in (4096, 2048, 1024, 512, 256):
            if n_main % w == 0:
                width = w
                break
        rows = n_main // width
        main2d = x_flat[:n_main].reshape(rows, width)
        pieces.append(jnp.ravel(_quant_2d(main2d, gp)))

    if n_main < n:
        tail = x_flat[n_main:].astype(jnp.float32)
        r = jnp.round(tail)
        d = tail - r
        pieces.append((r + d * d * d).astype(dtype))

    out_flat = pieces[0] if len(pieces) == 1 else jnp.concatenate(pieces)
    return out_flat.reshape(orig_shape)


def _reference(x):
    r = jnp.round(x)
    return r + (x - r) ** 3


if __name__ == "__main__":
    key = jax.random.PRNGKey(0)

    # Primary test: NCHW input consistent with a conv-style module.
    x = jax.random.normal(key, (2, 4, 16, 16), dtype=jnp.float32) * 3.0
    y = example_quant(x)
    jax.block_until_ready(y)
    assert y.shape == x.shape and y.dtype == x.dtype
    assert jnp.allclose(y, _reference(x), atol=1e-6, rtol=1e-6)

    # Ragged test (n % 128 != 0) to exercise the aligned-bulk + jnp-tail path.
    k2 = jax.random.fold_in(key, 1)
    x2 = jax.random.normal(k2, (5, 7, 11), dtype=jnp.float32) * 3.0
    y2 = example_quant(x2)
    jax.block_until_ready(y2)
    assert y2.shape == x2.shape and y2.dtype == x2.dtype
    assert jnp.allclose(y2, _reference(x2), atol=1e-6, rtol=1e-6)

    print("KERNEL_OK")
</pallas_src>

<mosaic_0001>
module attributes {stable_mosaic.version = 11 : i64} {
  func.func @_quant_kernel(%arg0: i32, %arg1: memref<1x2048xf32, #tpu.memory_space<vmem>>, %arg2: memref<1x2048xf32, #tpu.memory_space<vmem>>) attributes {dimension_semantics = [#tpu.dimension_semantics<parallel>], iteration_bounds = array<i64: 1>, scalar_prefetch = 0 : i64, scratch_operands = 0 : i64, tpu.core_type = #tpu.core_type<tc>, window_params = [{transform_indices = @transform_0, window_bounds = array<i64: 1, 2048>}, {transform_indices = @transform_1, window_bounds = array<i64: 1, 2048>}]} {
    %c0 = arith.constant 0 : index
    %c0_0 = arith.constant 0 : index
    %0 = vector.load %arg1[%c0, %c0_0] : memref<1x2048xf32, #tpu.memory_space<vmem>>, vector<1x2048xf32>
    %1 = math.roundeven %0 : vector<1x2048xf32>
    %2 = arith.subf %0, %1 : vector<1x2048xf32>
    %3 = arith.mulf %2, %2 : vector<1x2048xf32>
    %4 = arith.mulf %3, %2 : vector<1x2048xf32>
    %5 = arith.addf %1, %4 : vector<1x2048xf32>
    %c0_1 = arith.constant 0 : index
    %c0_2 = arith.constant 0 : index
    %6 = vector.load %arg2[%c0_1, %c0_2] : memref<1x2048xf32, #tpu.memory_space<vmem>>, vector<1x2048xf32>
    tpu.vector_store %arg2[%c0_1, %c0_2], %5 {strides = array<i32>} : memref<1x2048xf32, #tpu.memory_space<vmem>>, vector<1x2048xf32>,
    return
  }
  func.func @transform_0(%arg0: i32) -> (i32, i32) {
    %c0_i32 = arith.constant 0 : i32
    %c0_i32_0 = arith.constant 0 : i32
    return %arg0, %c0_i32 : i32, i32
  }
  func.func @transform_1(%arg0: i32) -> (i32, i32) {
    %c0_i32 = arith.constant 0 : i32
    %c0_i32_0 = arith.constant 0 : i32
    return %arg0, %c0_i32 : i32, i32
  }
}

</mosaic_0001>

<llo_original>
// kernel: tpu_custom_call.1
$region0: #{tpu_custom_call.1}
  #allocation0 [shape = 'u32[]', space=smem, size = 0x4, offset = 0x4, fixed_abs, tag = 'smem constant byte address 0x4 - core index']
  #allocation1 [shape = 'u32[144,128]{1,0:T(1,128)}', space=vmem, size = 0x12000, scoped, tag = 'internal scratch']
  %s0 = inlined_call_operand.hbm [shape: f32[1,2048], index: 0, kind: input, shape index: {}, may-alias: {0,1}]
  %s1 = inlined_call_operand.hbm [shape: f32[1,2048], index: 1, kind: output, shape index: {}, may-alias: {0,1}]
  %s2 = sld [smem:[#allocation0]]
  $region18: #{tpu_custom_call.1} parent=0
    _
  %s4 = ssub.s32 1, %s2
  %s5 = scalar_select 0, %s4, %s2
  $region1: #{tpu_custom_call.1} parent=0
    #allocation2 [shape = 'u8[8192]{0}', space=vmem, size = 0x2000, scoped, tag = 'input window, operand 0, single buffered']
    #allocation3 [shape = 's32[1]{0}', space=sflag, size = 0x4, scoped, tag = 'scoped memory for tpu_custom_call.1']
    #allocation4 [shape = 's32[1]{0}', space=sflag, size = 0x4, scoped, tag = 'scoped memory for tpu_custom_call.1']
    #allocation5 [shape = 'u8[8192]{0}', space=vmem, size = 0x2000, scoped, tag = 'output window, operand 0, single buffered']
    %6 = vsyncpa [#allocation3], 0
    %7 = vsyncpa [#allocation4], 0
    // Predicated region
    $region2: #{tpu_custom_call.1} parent=1 // pred_check
      _
    $region3: #{tpu_custom_call.1} parent=1 // pred_check_branch
      %9 = sbr.rel (0) target = $region5
    $region4: #{tpu_custom_call.1} parent=1 // pred_region
      %s11 = ssub.s32 256, 256
      %12 = vsyncadd [#allocation3], %s11
      %s14 = sshll.u32 [#allocation2], 4
      %s15 = int_to_ptr.vmem [resolvable:$true] %s14
      %17 = dma.hbm_to_vmem [thread:$0]  %s0, 256, %s15, [#allocation3]
    $region5: #{tpu_custom_call.1} parent=1 // pred_fallthru
      _
    // Predicated region
    $region6: #{tpu_custom_call.1} parent=1 // pred_check
      _
    $region7: #{tpu_custom_call.1} parent=1 // pred_check_branch
      %19 = sbr.rel (0) target = $region9
    $region8: #{tpu_custom_call.1} parent=1 // pred_region
      %20 = dma.done [#allocation3], 256
    $region9: #{tpu_custom_call.1} parent=1 // pred_fallthru
      _
    %v21 = vld [vmem:[#allocation2] sm:$0xff]
    %v22 = vld [vmem:[#allocation2 + $0x8] sm:$0xff]
    %v23 = vround.ne.pseudo %v21
    %v24 = vround.ne.pseudo %v22
    %v25 = vsub.f32 %v21, %v23
    %v26 = vsub.f32 %v22, %v24
    %v27 = vmul.f32 %v25, %v25
    %v28 = vmul.f32 %v26, %v26
    %v29 = vmul.f32 %v27, %v25
    %v30 = vmul.f32 %v28, %v26
    %v31 = vadd.f32 %v23, %v29
    %v32 = vadd.f32 %v24, %v30
    %33 = vst [vmem:[#allocation5] sm:$0xff] %v31
    %34 = vst [vmem:[#allocation5 + $0x8] sm:$0xff] %v32
    // Predicated region
    $region10: #{tpu_custom_call.1} parent=1 // pred_check
      _
    $region11: #{tpu_custom_call.1} parent=1 // pred_check_branch
      %36 = sbr.rel (0) target = $region13
    $region12: #{tpu_custom_call.1} parent=1 // pred_region
      %s38 = ssub.s32 256, 256
      %39 = vsyncadd [#allocation4], %s38
      %s41 = sshll.u32 [#allocation5], 4
      %s42 = int_to_ptr.vmem [resolvable:$true] %s41
      %44 = dma.vmem_to_hbm [thread:$0]  %s42, 256, %s1, [#allocation4]
    $region13: #{tpu_custom_call.1} parent=1 // pred_fallthru
      _
    // Predicated region
    $region14: #{tpu_custom_call.1} parent=1 // pred_check
      _
    $region15: #{tpu_custom_call.1} parent=1 // pred_check_branch
      %46 = sbr.rel (0) target = $region17
    $region16: #{tpu_custom_call.1} parent=1 // pred_region
      %47 = dma.done [#allocation4], 256
    $region17: #{tpu_custom_call.1} parent=1 // pred_fallthru
      _
    %48 = vsyncpa [#allocation3], 1
    %49 = vsyncpa [#allocation4], 1

</llo_original>
